<compile_context>
chip_gen: v6e
topology: v6e:2x2x1
jax: 0.10.0
libtpu: 0.0.40
codegen_flags: <defaults>
</compile_context>

<pallas_src>
import functools

import jax
import jax.numpy as jnp
from jax import lax
from jax.experimental import pallas as pl
from jax.experimental.pallas import tpu as pltpu


def _round_up(a, b):
    return (a + b - 1) // b * b


# ----------------------------------------------------------------------------
# Pallas kernels
# ----------------------------------------------------------------------------
def _conv3x3_im2col_kernel(x_ref, w_ref, b_ref, o_ref, buf_ref, col_ref,
                           *, H, W, Cin, B, OFF, K_pad):
    """3x3 'same' conv for B images per grid step, flattened-spatial layout.

    x_ref:   (B, Cin, H*W)        inputs; channels on sublanes, pixels on lanes
    w_ref:   (Cout_pad, K_pad)    im2col weights (resident, zero-padded rows/cols)
    b_ref:   (Cout_pad, 1)        bias (f32, zero-padded)
    o_ref:   (B, Cout_pad, H*W)   outputs (NCHW order, spatial flattened)
    buf_ref: (Cin, OFF+H*W+OFF)   halo'd image buffer (contents outside the
                                  image are NEVER zeroed -> always masked)
    col_ref: (K_pad, B*H*W)       im2col RHS slab for the whole step
    """
    HW = H * W
    K = 9 * Cin

    # Boundary masks depend only on the flattened pixel index -> one (1, HW)
    # lane iota, `&` instead of `%` when W is a power of two.
    lane = lax.broadcasted_iota(jnp.int32, (1, HW), 1)
    if W & (W - 1) == 0:
        col_in_row = lane & (W - 1)
    else:
        col_in_row = lane % W
    h_ok = {-1: lane >= W, 0: None, 1: lane < (HW - W)}          # height taps
    w_ok = {-1: col_in_row != 0, 0: None, 1: col_in_row != (W - 1)}  # width taps

    # Zero only the K-padding rows of the col scratch (their weight columns are
    # zero on the host, but 0 * stale-NaN would still poison the accumulation).
    # ~2 vregs of stores per step; deliberately NOT hoisted under
    # pl.when(program_id == 0): with a "parallel" grid axis the steps can be
    # split across TensorCores and each core has its own scratch copy.
    if K_pad > K:
        col_ref[K:, :] = jnp.zeros((K_pad - K, B * HW), jnp.float32)

    for b in range(B):   # static (trace-time) unroll over this step's images
        # Copy image b into the halo'd buffer at a 128-aligned lane offset
        # -> unmasked, lane-aligned store.  Halos stay uninitialised.
        buf_ref[:, OFF:OFF + HW] = x_ref[b]

        # Each 3x3 tap is a static lane-slice of the buffer (cheap lane shift),
        # masked (jnp.where, so halo garbage incl. NaN is dropped) and written
        # at a static sublane offset into the col scratch.
        for kh in range(3):
            for kw in range(3):
                dh, dw = kh - 1, kw - 1
                k = kh * 3 + kw
                start = OFF + dh * W + dw
                tap = buf_ref[:, start:start + HW]            # (Cin, HW)
                mh, mw = h_ok[dh], w_ok[dw]
                if mh is not None and mw is not None:
                    mask = jnp.logical_and(mh, mw)
                elif mh is not None:
                    mask = mh
                else:
                    mask = mw
                if mask is not None:
                    tap = jnp.where(mask, tap, 0.0)           # (1,HW) bcast
                col_ref[k * Cin:(k + 1) * Cin, b * HW:(b + 1) * HW] = tap

    # One MXU matmul for the whole step: (Cout_pad, K_pad) x (K_pad, B*HW).
    lhs = w_ref[...]
    rhs = col_ref[...]
    if lhs.dtype != rhs.dtype:
        rhs = rhs.astype(lhs.dtype)    # bf16 MXU operands on v6e/v7x (opt-in)
    out = jnp.dot(lhs, rhs, preferred_element_type=jnp.float32)
    out = out + b_ref[...]             # f32 bias add on the VPU (v5e-safe)

    for b in range(B):                 # lane-aligned (Cout_pad, HW) stores
        o_ref[b] = out[:, b * HW:(b + 1) * HW].astype(o_ref.dtype)


def _zero_kernel(x_ref, o_ref):
    """Zero op: x * 0 (keeps PyTorch x.mul(0) NaN/Inf propagation semantics)."""
    o_ref[...] = x_ref[...] * jnp.zeros((), dtype=x_ref.dtype)


# ----------------------------------------------------------------------------
# Wrappers (layout is NCHW end-to-end; only free reshapes, no transpose/pad of x)
# ----------------------------------------------------------------------------
def conv3x3_pallas(x_nchw, w2d_pad, b2_pad, *, images_per_step=None):
    """x_nchw: (N, Cin, H, W); w2d_pad: (Cout_pad, K_pad); b2_pad: (Cout_pad, 1).

    Returns (N, Cout_pad, H*W); caller slices the padded channels off.
    """
    N, Cin, H, W = x_nchw.shape
    Cout_pad, K_pad = w2d_pad.shape
    HW = H * W
    OFF = _round_up(W + 1, 128)   # keeps the per-step image copy lane-aligned

    # Grid: >= 2 "parallel" steps keep both v7x TensorCores busy; as few steps
    # as possible amortise the ~0.35us per-step overhead on single-TC v5e/v6e.
    if images_per_step is None:
        num_steps = 2 if (N >= 2 and N % 2 == 0) else 1
        images_per_step = N // num_steps
    assert N % images_per_step == 0
    B = images_per_step
    num_steps = N // B

    x_flat = x_nchw.reshape(N, Cin, HW)   # free reshape -> lane-dense pixels

    kernel = functools.partial(_conv3x3_im2col_kernel,
                               H=H, W=W, Cin=Cin, B=B, OFF=OFF, K_pad=K_pad)

    flops = 2 * N * HW * K_pad * Cout_pad
    bytes_accessed = 4 * (N * Cin * HW + Cout_pad * K_pad + Cout_pad
                          + N * Cout_pad * HW)

    # TODO(synk): for production H*W / Cin, tile the flattened spatial axis so
    # the (K_pad, B*HW_tile) col slab + double-buffered blocks fit v7x's 64 MiB.
    out_flat = pl.pallas_call(
        kernel,
        out_shape=jax.ShapeDtypeStruct((N, Cout_pad, HW), x_nchw.dtype),
        grid_spec=pltpu.PrefetchScalarGridSpec(
            num_scalar_prefetch=0,
            grid=(num_steps,),
            in_specs=[
                pl.BlockSpec((B, Cin, HW), lambda s: (s, 0, 0)),
                pl.BlockSpec((Cout_pad, K_pad), lambda s: (0, 0)),   # resident
                pl.BlockSpec((Cout_pad, 1), lambda s: (0, 0)),       # resident
            ],
            out_specs=pl.BlockSpec((B, Cout_pad, HW), lambda s: (s, 0, 0)),
            scratch_shapes=[
                pltpu.VMEM((Cin, OFF + HW + OFF), jnp.float32),   # halo'd image
                pltpu.VMEM((K_pad, B * HW), jnp.float32),         # im2col slab
            ],
        ),
        compiler_params=pltpu.CompilerParams(
            dimension_semantics=("parallel",),
            vmem_limit_bytes=32 * 1024 * 1024),
        cost_estimate=pl.CostEstimate(
            flops=flops, transcendentals=0, bytes_accessed=bytes_accessed),
    )(x_flat, w2d_pad, b2_pad)

    return out_flat


def zero_pallas(x_nchw):
    """Zero op: one single-step, lane-dense block (no per-image grid launch)."""
    N, C, H, W = x_nchw.shape
    flat = x_nchw.reshape(N * C, H * W)         # free reshape, lane-dense
    out = pl.pallas_call(
        _zero_kernel,
        out_shape=jax.ShapeDtypeStruct(flat.shape, flat.dtype),
    )(flat)
    return out.reshape(N, C, H, W)


class EdgePallas:
    """Mirror of graph2net Edge: forward(x, zero) -> op(x) or Zero(x)."""

    def __init__(self, w_hwio, b, mxu_dtype=jnp.float32):
        # w_hwio: (3, 3, Cin, Cout), b: (Cout,).  Precompute the im2col weight
        # matrix once (host side): row order = (kh*3 + kw)*Cin + ci, then pad
        # Cout -> multiple of 8 and K -> multiple of 8 with zeros.
        kh, kw, Cin, Cout = w_hwio.shape
        assert (kh, kw) == (3, 3)
        K = 9 * Cin
        K_pad = _round_up(K, 8)
        Cout_pad = _round_up(Cout, 8)
        w2d = jnp.transpose(w_hwio.reshape(K, Cout))          # (Cout, 9*Cin)
        w2d = jnp.pad(w2d, ((0, Cout_pad - Cout), (0, K_pad - K)))
        self.w2d = w2d.astype(mxu_dtype)                      # MXU operand dtype
        self.b2 = jnp.pad(b.reshape(Cout, 1),
                          ((0, Cout_pad - Cout), (0, 0))).astype(jnp.float32)
        self.cout = Cout

    def __call__(self, x, zero=False):
        if zero:
            return zero_pallas(x)
        N, _, H, W = x.shape
        out = conv3x3_pallas(x, self.w2d, self.b2)            # (N, Cout_pad, HW)
        return out[:, :self.cout, :].reshape(N, self.cout, H, W)


# ----------------------------------------------------------------------------
# Main
# ----------------------------------------------------------------------------
if __name__ == "__main__":
    key = jax.random.PRNGKey(0)
    k_x, k_w, k_b = jax.random.split(key, 3)

    N, Cin, H, W = 4, 4, 16, 16      # N=4 -> 2 parallel steps x 2 images/step
    Cout = 4

    x = jax.random.normal(k_x, (N, Cin, H, W), dtype=jnp.float32)
    w = jax.random.normal(k_w, (3, 3, Cin, Cout), dtype=jnp.float32) * 0.1
    b = jax.random.normal(k_b, (Cout,), dtype=jnp.float32) * 0.01

    # Plain-JAX reference for the conv path.
    w_oihw = jnp.transpose(w, (3, 2, 0, 1))  # (Cout, Cin, 3, 3)
    y_ref = jax.lax.conv_general_dilated(
        x, w_oihw, window_strides=(1, 1), padding="SAME",
        dimension_numbers=("NCHW", "OIHW", "NCHW"),
    ) + b.reshape(1, Cout, 1, 1)

    # --- op_function path (3x3 conv), f32 MXU operands --------------------
    edge = EdgePallas(w, b)
    y = jax.block_until_ready(edge(x, zero=False))
    assert y.shape == (N, Cout, H, W)
    assert jnp.allclose(y, y_ref, atol=1e-4, rtol=1e-4)

    # --- same edge with bf16 MXU operands (v6e/v7x option), looser tol ----
    edge_bf16 = EdgePallas(w, b, mxu_dtype=jnp.bfloat16)
    y_bf16 = jax.block_until_ready(edge_bf16(x, zero=False))
    assert jnp.allclose(y_bf16, y_ref, atol=5e-2, rtol=5e-2)

    # --- Zero path (outputs are x*0: zero for finite x, NaN stays NaN) ----
    y0 = jax.block_until_ready(edge(x, zero=True))
    assert y0.shape == x.shape
    assert jnp.all(y0 == 0)

    print("KERNEL_OK")
</pallas_src>

<mosaic_0001>
module attributes {stable_mosaic.version = 11 : i64} {
  func.func @_conv3x3_im2col_kernel(%arg0: i32, %arg1: memref<2x4x256xf32, #tpu.memory_space<vmem>>, %arg2: memref<8x40xf32, #tpu.memory_space<vmem>>, %arg3: memref<8x1xf32, #tpu.memory_space<vmem>>, %arg4: memref<2x8x256xf32, #tpu.memory_space<vmem>>, %arg5: memref<4x512xf32, #tpu.memory_space<vmem>>, %arg6: memref<40x512xf32, #tpu.memory_space<vmem>>) attributes {dimension_semantics = [#tpu.dimension_semantics<parallel>], iteration_bounds = array<i64: 2>, scalar_prefetch = 0 : i64, scratch_operands = 2 : i64, tpu.core_type = #tpu.core_type<tc>, window_params = [{transform_indices = @transform_0, window_bounds = array<i64: 2, 4, 256>}, {pipeline_mode = #tpu.pipeline_mode<synchronous>, transform_indices = @transform_1, window_bounds = array<i64: 8, 40>}, {pipeline_mode = #tpu.pipeline_mode<synchronous>, transform_indices = @transform_2, window_bounds = array<i64: 8, 1>}, {transform_indices = @transform_3, window_bounds = array<i64: 2, 8, 256>}]} {
    %0 = tpu.iota {dimensions = array<i32: 1>} : vector<1x256xi32>
    %c15_i32 = arith.constant 15 : i32
    %1 = vector.broadcast %c15_i32 : i32 to vector<1x256xi32>
    %2 = arith.andi %0, %1 : vector<1x256xi32>
    %c16_i32 = arith.constant 16 : i32
    %3 = vector.broadcast %c16_i32 : i32 to vector<1x256xi32>
    %4 = arith.cmpi sge, %0, %3 : vector<1x256xi32>
    %c240_i32 = arith.constant 240 : i32
    %5 = vector.broadcast %c240_i32 : i32 to vector<1x256xi32>
    %6 = arith.cmpi slt, %0, %5 : vector<1x256xi32>
    %c0_i32 = arith.constant 0 : i32
    %7 = vector.broadcast %c0_i32 : i32 to vector<1x256xi32>
    %8 = arith.cmpi ne, %2, %7 : vector<1x256xi32>
    %c15_i32_0 = arith.constant 15 : i32
    %9 = vector.broadcast %c15_i32_0 : i32 to vector<1x256xi32>
    %10 = arith.cmpi ne, %2, %9 : vector<1x256xi32>
    %cst = arith.constant 0.000000e+00 : f32
    %11 = vector.broadcast %cst : f32 to vector<4x512xf32>
    %c36 = arith.constant 36 : index
    %c0 = arith.constant 0 : index
    %12 = vector.load %arg6[%c36, %c0] : memref<40x512xf32, #tpu.memory_space<vmem>>, vector<4x512xf32>
    tpu.vector_store %arg6[%c36, %c0], %11 {strides = array<i32>} : memref<40x512xf32, #tpu.memory_space<vmem>>, vector<4x512xf32>,
    %c0_1 = arith.constant 0 : index
    %c0_2 = arith.constant 0 : index
    %c0_3 = arith.constant 0 : index
    %13 = vector.load %arg1[%c0_1, %c0_2, %c0_3] : memref<2x4x256xf32, #tpu.memory_space<vmem>>, vector<1x4x256xf32>
    %14 = vector.shape_cast %13 : vector<1x4x256xf32> to vector<4x256xf32>
    %c0_4 = arith.constant 0 : index
    %c128 = arith.constant 128 : index
    %15 = vector.load %arg5[%c0_4, %c128] : memref<4x512xf32, #tpu.memory_space<vmem>>, vector<4x256xf32>
    tpu.vector_store %arg5[%c0_4, %c128], %14 {strides = array<i32>} : memref<4x512xf32, #tpu.memory_space<vmem>>, vector<4x256xf32>,
    %c0_5 = arith.constant 0 : index
    %c111 = arith.constant 111 : index
    %16 = vector.load %arg5[%c0_5, %c111] : memref<4x512xf32, #tpu.memory_space<vmem>>, vector<4x256xf32>
    %17 = arith.andi %4, %8 : vector<1x256xi1>
    %cst_6 = arith.constant 0.000000e+00 : f32
    %18 = vector.shape_cast %17 : vector<1x256xi1> to vector<1x256xi1>
    %19 = vector.broadcast %18 : vector<1x256xi1> to vector<4x256xi1>
    %20 = vector.broadcast %cst_6 : f32 to vector<4x256xf32>
    %21 = arith.select %19, %16, %20 : vector<4x256xi1>, vector<4x256xf32>
    %c0_7 = arith.constant 0 : index
    %c0_8 = arith.constant 0 : index
    %22 = vector.load %arg6[%c0_7, %c0_8] : memref<40x512xf32, #tpu.memory_space<vmem>>, vector<4x256xf32>
    tpu.vector_store %arg6[%c0_7, %c0_8], %21 {strides = array<i32>} : memref<40x512xf32, #tpu.memory_space<vmem>>, vector<4x256xf32>,
    %c0_9 = arith.constant 0 : index
    %c112 = arith.constant 112 : index
    %23 = vector.load %arg5[%c0_9, %c112] : memref<4x512xf32, #tpu.memory_space<vmem>>, vector<4x256xf32>
    %cst_10 = arith.constant 0.000000e+00 : f32
    %24 = vector.shape_cast %4 : vector<1x256xi1> to vector<1x256xi1>
    %25 = vector.broadcast %24 : vector<1x256xi1> to vector<4x256xi1>
    %26 = vector.broadcast %cst_10 : f32 to vector<4x256xf32>
    %27 = arith.select %25, %23, %26 : vector<4x256xi1>, vector<4x256xf32>
    %c4 = arith.constant 4 : index
    %c0_11 = arith.constant 0 : index
    %28 = vector.load %arg6[%c4, %c0_11] : memref<40x512xf32, #tpu.memory_space<vmem>>, vector<4x256xf32>
    tpu.vector_store %arg6[%c4, %c0_11], %27 {strides = array<i32>} : memref<40x512xf32, #tpu.memory_space<vmem>>, vector<4x256xf32>,
    %c0_12 = arith.constant 0 : index
    %c113 = arith.constant 113 : index
    %29 = vector.load %arg5[%c0_12, %c113] : memref<4x512xf32, #tpu.memory_space<vmem>>, vector<4x256xf32>
    %30 = arith.andi %4, %10 : vector<1x256xi1>
    %cst_13 = arith.constant 0.000000e+00 : f32
    %31 = vector.shape_cast %30 : vector<1x256xi1> to vector<1x256xi1>
    %32 = vector.broadcast %31 : vector<1x256xi1> to vector<4x256xi1>
    %33 = vector.broadcast %cst_13 : f32 to vector<4x256xf32>
    %34 = arith.select %32, %29, %33 : vector<4x256xi1>, vector<4x256xf32>
    %c8 = arith.constant 8 : index
    %c0_14 = arith.constant 0 : index
    %35 = vector.load %arg6[%c8, %c0_14] : memref<40x512xf32, #tpu.memory_space<vmem>>, vector<4x256xf32>
    tpu.vector_store %arg6[%c8, %c0_14], %34 {strides = array<i32>} : memref<40x512xf32, #tpu.memory_space<vmem>>, vector<4x256xf32>,
    %c0_15 = arith.constant 0 : index
    %c127 = arith.constant 127 : index
    %36 = vector.load %arg5[%c0_15, %c127] : memref<4x512xf32, #tpu.memory_space<vmem>>, vector<4x256xf32>
    %cst_16 = arith.constant 0.000000e+00 : f32
    %37 = vector.shape_cast %8 : vector<1x256xi1> to vector<1x256xi1>
    %38 = vector.broadcast %37 : vector<1x256xi1> to vector<4x256xi1>
    %39 = vector.broadcast %cst_16 : f32 to vector<4x256xf32>
    %40 = arith.select %38, %36, %39 : vector<4x256xi1>, vector<4x256xf32>
    %c12 = arith.constant 12 : index
    %c0_17 = arith.constant 0 : index
    %41 = vector.load %arg6[%c12, %c0_17] : memref<40x512xf32, #tpu.memory_space<vmem>>, vector<4x256xf32>
    tpu.vector_store %arg6[%c12, %c0_17], %40 {strides = array<i32>} : memref<40x512xf32, #tpu.memory_space<vmem>>, vector<4x256xf32>,
    %c0_18 = arith.constant 0 : index
    %c128_19 = arith.constant 128 : index
    %42 = vector.load %arg5[%c0_18, %c128_19] : memref<4x512xf32, #tpu.memory_space<vmem>>, vector<4x256xf32>
    %c16 = arith.constant 16 : index
    %c0_20 = arith.constant 0 : index
    %43 = vector.load %arg6[%c16, %c0_20] : memref<40x512xf32, #tpu.memory_space<vmem>>, vector<4x256xf32>
    tpu.vector_store %arg6[%c16, %c0_20], %42 {strides = array<i32>} : memref<40x512xf32, #tpu.memory_space<vmem>>, vector<4x256xf32>,
    %c0_21 = arith.constant 0 : index
    %c129 = arith.constant 129 : index
    %44 = vector.load %arg5[%c0_21, %c129] : memref<4x512xf32, #tpu.memory_space<vmem>>, vector<4x256xf32>
    %cst_22 = arith.constant 0.000000e+00 : f32
    %45 = vector.shape_cast %10 : vector<1x256xi1> to vector<1x256xi1>
    %46 = vector.broadcast %45 : vector<1x256xi1> to vector<4x256xi1>
    %47 = vector.broadcast %cst_22 : f32 to vector<4x256xf32>
    %48 = arith.select %46, %44, %47 : vector<4x256xi1>, vector<4x256xf32>
    %c20 = arith.constant 20 : index
    %c0_23 = arith.constant 0 : index
    %49 = vector.load %arg6[%c20, %c0_23] : memref<40x512xf32, #tpu.memory_space<vmem>>, vector<4x256xf32>
    tpu.vector_store %arg6[%c20, %c0_23], %48 {strides = array<i32>} : memref<40x512xf32, #tpu.memory_space<vmem>>, vector<4x256xf32>,
    %c0_24 = arith.constant 0 : index
    %c143 = arith.constant 143 : index
    %50 = vector.load %arg5[%c0_24, %c143] : memref<4x512xf32, #tpu.memory_space<vmem>>, vector<4x256xf32>
    %51 = arith.andi %6, %8 : vector<1x256xi1>
    %cst_25 = arith.constant 0.000000e+00 : f32
    %52 = vector.shape_cast %51 : vector<1x256xi1> to vector<1x256xi1>
    %53 = vector.broadcast %52 : vector<1x256xi1> to vector<4x256xi1>
    %54 = vector.broadcast %cst_25 : f32 to vector<4x256xf32>
    %55 = arith.select %53, %50, %54 : vector<4x256xi1>, vector<4x256xf32>
    %c24 = arith.constant 24 : index
    %c0_26 = arith.constant 0 : index
    %56 = vector.load %arg6[%c24, %c0_26] : memref<40x512xf32, #tpu.memory_space<vmem>>, vector<4x256xf32>
    tpu.vector_store %arg6[%c24, %c0_26], %55 {strides = array<i32>} : memref<40x512xf32, #tpu.memory_space<vmem>>, vector<4x256xf32>,
    %c0_27 = arith.constant 0 : index
    %c144 = arith.constant 144 : index
    %57 = vector.load %arg5[%c0_27, %c144] : memref<4x512xf32, #tpu.memory_space<vmem>>, vector<4x256xf32>
    %cst_28 = arith.constant 0.000000e+00 : f32
    %58 = vector.shape_cast %6 : vector<1x256xi1> to vector<1x256xi1>
    %59 = vector.broadcast %58 : vector<1x256xi1> to vector<4x256xi1>
    %60 = vector.broadcast %cst_28 : f32 to vector<4x256xf32>
    %61 = arith.select %59, %57, %60 : vector<4x256xi1>, vector<4x256xf32>
    %c28 = arith.constant 28 : index
    %c0_29 = arith.constant 0 : index
    %62 = vector.load %arg6[%c28, %c0_29] : memref<40x512xf32, #tpu.memory_space<vmem>>, vector<4x256xf32>
    tpu.vector_store %arg6[%c28, %c0_29], %61 {strides = array<i32>} : memref<40x512xf32, #tpu.memory_space<vmem>>, vector<4x256xf32>,
    %c0_30 = arith.constant 0 : index
    %c145 = arith.constant 145 : index
    %63 = vector.load %arg5[%c0_30, %c145] : memref<4x512xf32, #tpu.memory_space<vmem>>, vector<4x256xf32>
    %64 = arith.andi %6, %10 : vector<1x256xi1>
    %cst_31 = arith.constant 0.000000e+00 : f32
    %65 = vector.shape_cast %64 : vector<1x256xi1> to vector<1x256xi1>
    %66 = vector.broadcast %65 : vector<1x256xi1> to vector<4x256xi1>
    %67 = vector.broadcast %cst_31 : f32 to vector<4x256xf32>
    %68 = arith.select %66, %63, %67 : vector<4x256xi1>, vector<4x256xf32>
    %c32 = arith.constant 32 : index
    %c0_32 = arith.constant 0 : index
    %69 = vector.load %arg6[%c32, %c0_32] : memref<40x512xf32, #tpu.memory_space<vmem>>, vector<4x256xf32>
    tpu.vector_store %arg6[%c32, %c0_32], %68 {strides = array<i32>} : memref<40x512xf32, #tpu.memory_space<vmem>>, vector<4x256xf32>,
    %c1 = arith.constant 1 : index
    %c0_33 = arith.constant 0 : index
    %c0_34 = arith.constant 0 : index
    %70 = vector.load %arg1[%c1, %c0_33, %c0_34] : memref<2x4x256xf32, #tpu.memory_space<vmem>>, vector<1x4x256xf32>
    %71 = vector.shape_cast %70 : vector<1x4x256xf32> to vector<4x256xf32>
    %c0_35 = arith.constant 0 : index
    %c128_36 = arith.constant 128 : index
    %72 = vector.load %arg5[%c0_35, %c128_36] : memref<4x512xf32, #tpu.memory_space<vmem>>, vector<4x256xf32>
    tpu.vector_store %arg5[%c0_35, %c128_36], %71 {strides = array<i32>} : memref<4x512xf32, #tpu.memory_space<vmem>>, vector<4x256xf32>,
    %c0_37 = arith.constant 0 : index
    %c111_38 = arith.constant 111 : index
    %73 = vector.load %arg5[%c0_37, %c111_38] : memref<4x512xf32, #tpu.memory_space<vmem>>, vector<4x256xf32>
    %74 = arith.andi %4, %8 : vector<1x256xi1>
    %cst_39 = arith.constant 0.000000e+00 : f32
    %75 = vector.shape_cast %74 : vector<1x256xi1> to vector<1x256xi1>
    %76 = vector.broadcast %75 : vector<1x256xi1> to vector<4x256xi1>
    %77 = vector.broadcast %cst_39 : f32 to vector<4x256xf32>
    %78 = arith.select %76, %73, %77 : vector<4x256xi1>, vector<4x256xf32>
    %c0_40 = arith.constant 0 : index
    %c256 = arith.constant 256 : index
    %79 = vector.load %arg6[%c0_40, %c256] : memref<40x512xf32, #tpu.memory_space<vmem>>, vector<4x256xf32>
    tpu.vector_store %arg6[%c0_40, %c256], %78 {strides = array<i32>} : memref<40x512xf32, #tpu.memory_space<vmem>>, vector<4x256xf32>,
    %c0_41 = arith.constant 0 : index
    %c112_42 = arith.constant 112 : index
    %80 = vector.load %arg5[%c0_41, %c112_42] : memref<4x512xf32, #tpu.memory_space<vmem>>, vector<4x256xf32>
    %cst_43 = arith.constant 0.000000e+00 : f32
    %81 = vector.shape_cast %4 : vector<1x256xi1> to vector<1x256xi1>
    %82 = vector.broadcast %81 : vector<1x256xi1> to vector<4x256xi1>
    %83 = vector.broadcast %cst_43 : f32 to vector<4x256xf32>
    %84 = arith.select %82, %80, %83 : vector<4x256xi1>, vector<4x256xf32>
    %c4_44 = arith.constant 4 : index
    %c256_45 = arith.constant 256 : index
    %85 = vector.load %arg6[%c4_44, %c256_45] : memref<40x512xf32, #tpu.memory_space<vmem>>, vector<4x256xf32>
    tpu.vector_store %arg6[%c4_44, %c256_45], %84 {strides = array<i32>} : memref<40x512xf32, #tpu.memory_space<vmem>>, vector<4x256xf32>,
    %c0_46 = arith.constant 0 : index
    %c113_47 = arith.constant 113 : index
    %86 = vector.load %arg5[%c0_46, %c113_47] : memref<4x512xf32, #tpu.memory_space<vmem>>, vector<4x256xf32>
    %87 = arith.andi %4, %10 : vector<1x256xi1>
    %cst_48 = arith.constant 0.000000e+00 : f32
    %88 = vector.shape_cast %87 : vector<1x256xi1> to vector<1x256xi1>
    %89 = vector.broadcast %88 : vector<1x256xi1> to vector<4x256xi1>
    %90 = vector.broadcast %cst_48 : f32 to vector<4x256xf32>
    %91 = arith.select %89, %86, %90 : vector<4x256xi1>, vector<4x256xf32>
    %c8_49 = arith.constant 8 : index
    %c256_50 = arith.constant 256 : index
    %92 = vector.load %arg6[%c8_49, %c256_50] : memref<40x512xf32, #tpu.memory_space<vmem>>, vector<4x256xf32>
    tpu.vector_store %arg6[%c8_49, %c256_50], %91 {strides = array<i32>} : memref<40x512xf32, #tpu.memory_space<vmem>>, vector<4x256xf32>,
    %c0_51 = arith.constant 0 : index
    %c127_52 = arith.constant 127 : index
    %93 = vector.load %arg5[%c0_51, %c127_52] : memref<4x512xf32, #tpu.memory_space<vmem>>, vector<4x256xf32>
    %cst_53 = arith.constant 0.000000e+00 : f32
    %94 = vector.shape_cast %8 : vector<1x256xi1> to vector<1x256xi1>
    %95 = vector.broadcast %94 : vector<1x256xi1> to vector<4x256xi1>
    %96 = vector.broadcast %cst_53 : f32 to vector<4x256xf32>
    %97 = arith.select %95, %93, %96 : vector<4x256xi1>, vector<4x256xf32>
    %c12_54 = arith.constant 12 : index
    %c256_55 = arith.constant 256 : index
    %98 = vector.load %arg6[%c12_54, %c256_55] : memref<40x512xf32, #tpu.memory_space<vmem>>, vector<4x256xf32>
    tpu.vector_store %arg6[%c12_54, %c256_55], %97 {strides = array<i32>} : memref<40x512xf32, #tpu.memory_space<vmem>>, vector<4x256xf32>,
    %c0_56 = arith.constant 0 : index
    %c128_57 = arith.constant 128 : index
    %99 = vector.load %arg5[%c0_56, %c128_57] : memref<4x512xf32, #tpu.memory_space<vmem>>, vector<4x256xf32>
    %c16_58 = arith.constant 16 : index
    %c256_59 = arith.constant 256 : index
    %100 = vector.load %arg6[%c16_58, %c256_59] : memref<40x512xf32, #tpu.memory_space<vmem>>, vector<4x256xf32>
    tpu.vector_store %arg6[%c16_58, %c256_59], %99 {strides = array<i32>} : memref<40x512xf32, #tpu.memory_space<vmem>>, vector<4x256xf32>,
    %c0_60 = arith.constant 0 : index
    %c129_61 = arith.constant 129 : index
    %101 = vector.load %arg5[%c0_60, %c129_61] : memref<4x512xf32, #tpu.memory_space<vmem>>, vector<4x256xf32>
    %cst_62 = arith.constant 0.000000e+00 : f32
    %102 = vector.shape_cast %10 : vector<1x256xi1> to vector<1x256xi1>
    %103 = vector.broadcast %102 : vector<1x256xi1> to vector<4x256xi1>
    %104 = vector.broadcast %cst_62 : f32 to vector<4x256xf32>
    %105 = arith.select %103, %101, %104 : vector<4x256xi1>, vector<4x256xf32>
    %c20_63 = arith.constant 20 : index
    %c256_64 = arith.constant 256 : index
    %106 = vector.load %arg6[%c20_63, %c256_64] : memref<40x512xf32, #tpu.memory_space<vmem>>, vector<4x256xf32>
    tpu.vector_store %arg6[%c20_63, %c256_64], %105 {strides = array<i32>} : memref<40x512xf32, #tpu.memory_space<vmem>>, vector<4x256xf32>,
    %c0_65 = arith.constant 0 : index
    %c143_66 = arith.constant 143 : index
    %107 = vector.load %arg5[%c0_65, %c143_66] : memref<4x512xf32, #tpu.memory_space<vmem>>, vector<4x256xf32>
    %108 = arith.andi %6, %8 : vector<1x256xi1>
    %cst_67 = arith.constant 0.000000e+00 : f32
    %109 = vector.shape_cast %108 : vector<1x256xi1> to vector<1x256xi1>
    %110 = vector.broadcast %109 : vector<1x256xi1> to vector<4x256xi1>
    %111 = vector.broadcast %cst_67 : f32 to vector<4x256xf32>
    %112 = arith.select %110, %107, %111 : vector<4x256xi1>, vector<4x256xf32>
    %c24_68 = arith.constant 24 : index
    %c256_69 = arith.constant 256 : index
    %113 = vector.load %arg6[%c24_68, %c256_69] : memref<40x512xf32, #tpu.memory_space<vmem>>, vector<4x256xf32>
    tpu.vector_store %arg6[%c24_68, %c256_69], %112 {strides = array<i32>} : memref<40x512xf32, #tpu.memory_space<vmem>>, vector<4x256xf32>,
    %c0_70 = arith.constant 0 : index
    %c144_71 = arith.constant 144 : index
    %114 = vector.load %arg5[%c0_70, %c144_71] : memref<4x512xf32, #tpu.memory_space<vmem>>, vector<4x256xf32>
    %cst_72 = arith.constant 0.000000e+00 : f32
    %115 = vector.shape_cast %6 : vector<1x256xi1> to vector<1x256xi1>
    %116 = vector.broadcast %115 : vector<1x256xi1> to vector<4x256xi1>
    %117 = vector.broadcast %cst_72 : f32 to vector<4x256xf32>
    %118 = arith.select %116, %114, %117 : vector<4x256xi1>, vector<4x256xf32>
    %c28_73 = arith.constant 28 : index
    %c256_74 = arith.constant 256 : index
    %119 = vector.load %arg6[%c28_73, %c256_74] : memref<40x512xf32, #tpu.memory_space<vmem>>, vector<4x256xf32>
    tpu.vector_store %arg6[%c28_73, %c256_74], %118 {strides = array<i32>} : memref<40x512xf32, #tpu.memory_space<vmem>>, vector<4x256xf32>,
    %c0_75 = arith.constant 0 : index
    %c145_76 = arith.constant 145 : index
    %120 = vector.load %arg5[%c0_75, %c145_76] : memref<4x512xf32, #tpu.memory_space<vmem>>, vector<4x256xf32>
    %121 = arith.andi %6, %10 : vector<1x256xi1>
    %cst_77 = arith.constant 0.000000e+00 : f32
    %122 = vector.shape_cast %121 : vector<1x256xi1> to vector<1x256xi1>
    %123 = vector.broadcast %122 : vector<1x256xi1> to vector<4x256xi1>
    %124 = vector.broadcast %cst_77 : f32 to vector<4x256xf32>
    %125 = arith.select %123, %120, %124 : vector<4x256xi1>, vector<4x256xf32>
    %c32_78 = arith.constant 32 : index
    %c256_79 = arith.constant 256 : index
    %126 = vector.load %arg6[%c32_78, %c256_79] : memref<40x512xf32, #tpu.memory_space<vmem>>, vector<4x256xf32>
    tpu.vector_store %arg6[%c32_78, %c256_79], %125 {strides = array<i32>} : memref<40x512xf32, #tpu.memory_space<vmem>>, vector<4x256xf32>,
    %c0_80 = arith.constant 0 : index
    %c0_81 = arith.constant 0 : index
    %127 = vector.load %arg2[%c0_80, %c0_81] : memref<8x40xf32, #tpu.memory_space<vmem>>, vector<8x40xf32>
    %c0_82 = arith.constant 0 : index
    %c0_83 = arith.constant 0 : index
    %128 = vector.load %arg6[%c0_82, %c0_83] : memref<40x512xf32, #tpu.memory_space<vmem>>, vector<40x512xf32>
    %cst_84 = arith.constant dense<0.000000e+00> : vector<8x512xf32>
    %129 = tpu.matmul %127, %128, %cst_84 {dimension_numbers = #tpu.dot_dimension_numbers<[1], [0], [0], [1], [0, 0, 1, 1], [], []>} : vector<8x40xf32>, vector<40x512xf32>, vector<8x512xf32> -> vector<8x512xf32>
    %c0_85 = arith.constant 0 : index
    %c0_86 = arith.constant 0 : index
    %130 = vector.load %arg3[%c0_85, %c0_86] : memref<8x1xf32, #tpu.memory_space<vmem>>, vector<8x1xf32>
    %131 = vector.broadcast %130 : vector<8x1xf32> to vector<8x512xf32>
    %132 = arith.addf %129, %131 : vector<8x512xf32>
    %133 = vector.extract_strided_slice %132 {offsets = [0, 0], sizes = [8, 256], strides = [1, 1]} : vector<8x512xf32> to vector<8x256xf32>
    %c0_87 = arith.constant 0 : index
    %c0_88 = arith.constant 0 : index
    %c0_89 = arith.constant 0 : index
    %134 = vector.load %arg4[%c0_87, %c0_88, %c0_89] : memref<2x8x256xf32, #tpu.memory_space<vmem>>, vector<1x8x256xf32>
    %135 = vector.shape_cast %134 : vector<1x8x256xf32> to vector<8x256xf32>
    %136 = vector.shape_cast %133 : vector<8x256xf32> to vector<1x8x256xf32>
    tpu.vector_store %arg4[%c0_87, %c0_88, %c0_89], %136 {strides = array<i32>} : memref<2x8x256xf32, #tpu.memory_space<vmem>>, vector<1x8x256xf32>,
    %137 = vector.extract_strided_slice %132 {offsets = [0, 256], sizes = [8, 256], strides = [1, 1]} : vector<8x512xf32> to vector<8x256xf32>
    %c1_90 = arith.constant 1 : index
    %c0_91 = arith.constant 0 : index
    %c0_92 = arith.constant 0 : index
    %138 = vector.load %arg4[%c1_90, %c0_91, %c0_92] : memref<2x8x256xf32, #tpu.memory_space<vmem>>, vector<1x8x256xf32>
    %139 = vector.shape_cast %138 : vector<1x8x256xf32> to vector<8x256xf32>
    %140 = vector.shape_cast %137 : vector<8x256xf32> to vector<1x8x256xf32>
    tpu.vector_store %arg4[%c1_90, %c0_91, %c0_92], %140 {strides = array<i32>} : memref<2x8x256xf32, #tpu.memory_space<vmem>>, vector<1x8x256xf32>,
    return
  }
  func.func @transform_0(%arg0: i32) -> (i32, i32, i32) {
    %c0_i32 = arith.constant 0 : i32
    %c0_i32_0 = arith.constant 0 : i32
    %c0_i32_1 = arith.constant 0 : i32
    return %arg0, %c0_i32, %c0_i32_0 : i32, i32, i32
  }
  func.func @transform_1(%arg0: i32) -> (i32, i32) {
    %c0_i32 = arith.constant 0 : i32
    %c0_i32_0 = arith.constant 0 : i32
    %c0_i32_1 = arith.constant 0 : i32
    return %c0_i32, %c0_i32_0 : i32, i32
  }
  func.func @transform_2(%arg0: i32) -> (i32, i32) {
    %c0_i32 = arith.constant 0 : i32
    %c0_i32_0 = arith.constant 0 : i32
    %c0_i32_1 = arith.constant 0 : i32
    return %c0_i32, %c0_i32_0 : i32, i32
  }
  func.func @transform_3(%arg0: i32) -> (i32, i32, i32) {
    %c0_i32 = arith.constant 0 : i32
    %c0_i32_0 = arith.constant 0 : i32
    %c0_i32_1 = arith.constant 0 : i32
    return %arg0, %c0_i32, %c0_i32_0 : i32, i32, i32
  }
}

</mosaic_0001>

<llo_original>
// kernel: tpu_custom_call.1
$region0: #{tpu_custom_call.1}
  #allocation0 [shape = 'u32[]', space=smem, size = 0x4, offset = 0x4, fixed_abs, tag = 'smem constant byte address 0x4 - core index']
  #allocation1 [shape = 'u32[144,128]{1,0:T(1,128)}', space=vmem, size = 0x12000, scoped, tag = 'internal scratch']
  #allocation2 [shape = 'f32[4,512]{1,0:T(4,128)}', space=vmem, size = 0x2000, scoped, tag = 'scratch operand']
  #allocation3 [shape = 'f32[40,512]{1,0:T(8,128)}', space=vmem, size = 0x14000, scoped, tag = 'scratch operand']
  %s0 = inlined_call_operand.hbm [shape: f32[4,4,256], index: 0, kind: input, shape index: {}]
  %s1 = inlined_call_operand.vmem [shape: f32[8,40], index: 1, kind: input, shape index: {}]
  %s2 = inlined_call_operand.vmem [shape: f32[8,1], index: 2, kind: input, shape index: {}]
  %s3 = inlined_call_operand.hbm [shape: f32[4,8,256], index: 3, kind: output, shape index: {}]
  %s4 = sld [smem:[#allocation0]]
  $region49: #{tpu_custom_call.1} parent=0
    _
  %s6 = ssub.s32 1, %s4
  %s7 = scalar_select 0, %s6, %s4
  $region1: #{tpu_custom_call.1} parent=0
    #allocation4 [shape = 'u8[16384]{0}', space=vmem, size = 0x4000, scoped, tag = 'input window, operand 0']
    #allocation5 [shape = 's32[2]{0}', space=sflag, size = 0x8, scoped, tag = 'scoped memory for tpu_custom_call.1']
    #allocation6 [shape = 's32[2]{0}', space=sflag, size = 0x8, scoped, tag = 'scoped memory for tpu_custom_call.1']
    #allocation7 [shape = 'u8[32768]{0}', space=vmem, size = 0x8000, scoped, tag = 'output window, operand 0']
    %8 = vsyncpa [#allocation5], 0
    %s9 = scalar_lea.sflag [#allocation5], 1
    %10 = vsyncpa %s9, 0
    %11 = vsyncpa [#allocation6], 0
    %s12 = scalar_lea.sflag [#allocation6], 1
    %13 = vsyncpa %s12, 0
    loop: start=0, step=1, limit=4
    $region2: #{tpu_custom_call.1} parent=1 // loop_pre_header
      _
    $region3: #{tpu_custom_call.1} parent=1 // loop_header
      %s15 = sphi 0, %s19
      %p16 = scmp.ge.s32.totalorder %s15, 4
      %s25 = sphi 0, %s27
      %s28 = sphi 0, %s25
      %s29 = sphi 0, %s28
      %s45 = sphi 0, %s29
      %s49 = sphi 0, %s49
      %s51 = sphi 0, %s49
      %s52 = sphi 0, %s51
      %s66 = sphi 0, %s52
      %s70 = sphi 0, %s70
      %s72 = sphi 0, %s70
      %s73 = sphi 0, %s72
      %s87 = sphi 0, %s73
      %s93 = sphi 0, %s95
      %s96 = sphi 0, %s93
      %s97 = sphi 0, %s96
      %s113 = sphi 0, %s97
    $region4: #{tpu_custom_call.1} parent=1 // loop_header_branch
      %18 = sbr.rel (%p16) target = $region8
    $region5: #{tpu_custom_call.1} parent=1 // loop_body
      %s20 = ssub.s32 %s15, 1
      %s21 = ssub.s32 %s15, 2
      %s22 = sadd.s32 %s15, 1
      %s23 = ssub.s32 %s15, %s22
      %p24 = scmp.eq.s32.totalorder %s23, 0
      %s26 = sadd.s32 %s25, 1
      %s27 = scalar_select %p24, %s25, %s26
      %p30 = pneg %p24
      %p31 = scmp.eq.s32.totalorder %s15, 1
      %p32 = por %p30, %p31
      %p33 = scmp.ne.s32.totalorder %s25, %s28
      %p34 = scmp.eq.s32.totalorder %s15, 0
      %p35 = por %p33, %p34
      %p36 = scmp.ne.s32.totalorder %s25, %s28
      %p37 = scmp.eq.s32.totalorder %s20, 1
      %p38 = por %p36, %p37
      %p39 = scmp.ne.s32.totalorder %s28, %s29
      %p40 = scmp.eq.s32.totalorder %s20, 0
      %p41 = por %p39, %p40
      %p42 = scmp.ne.s32.totalorder %s28, %s29
      %p43 = scmp.eq.s32.totalorder %s21, 1
      %p44 = por %p42, %p43
      %p46 = scmp.ne.s32.totalorder %s29, %s45
      %p47 = scmp.eq.s32.totalorder %s21, 0
      %p48 = por %p46, %p47
      %s50 = sadd.s32 %s49, 1
      %p53 = scmp.eq.s32.totalorder %s15, 1
      %p54 = scmp.ne.s32.totalorder %s49, %s51
      %p55 = scmp.eq.s32.totalorder %s15, 0
      %p56 = por %p54, %p55
      %p57 = scmp.ne.s32.totalorder %s49, %s51
      %p58 = scmp.eq.s32.totalorder %s20, 1
      %p59 = por %p57, %p58
      %p60 = scmp.ne.s32.totalorder %s51, %s52
      %p61 = scmp.eq.s32.totalorder %s20, 0
      %p62 = por %p60, %p61
      %p63 = scmp.ne.s32.totalorder %s51, %s52
      %p64 = scmp.eq.s32.totalorder %s21, 1
      %p65 = por %p63, %p64
      %p67 = scmp.ne.s32.totalorder %s52, %s66
      %p68 = scmp.eq.s32.totalorder %s21, 0
      %p69 = por %p67, %p68
      %s71 = sadd.s32 %s70, 1
      %p74 = scmp.eq.s32.totalorder %s15, 1
      %p75 = scmp.ne.s32.totalorder %s70, %s72
      %p76 = scmp.eq.s32.totalorder %s15, 0
      %p77 = por %p75, %p76
      %p78 = scmp.ne.s32.totalorder %s70, %s72
      %p79 = scmp.eq.s32.totalorder %s20, 1
      %p80 = por %p78, %p79
      %p81 = scmp.ne.s32.totalorder %s72, %s73
      %p82 = scmp.eq.s32.totalorder %s20, 0
      %p83 = por %p81, %p82
      %p84 = scmp.ne.s32.totalorder %s72, %s73
      %p85 = scmp.eq.s32.totalorder %s21, 1
      %p86 = por %p84, %p85
      %p88 = scmp.ne.s32.totalorder %s73, %s87
      %p89 = scmp.eq.s32.totalorder %s21, 0
      %p90 = por %p88, %p89
      %s91 = ssub.s32 %s15, %s22
      %p92 = scmp.eq.s32.totalorder %s91, 0
      %s94 = sadd.s32 %s93, 1
      %s95 = scalar_select %p92, %s93, %s94
      %p98 = pneg %p92
      %p99 = scmp.eq.s32.totalorder %s15, 1
      %p100 = por %p98, %p99
      %p101 = scmp.ne.s32.totalorder %s93, %s96
      %p102 = scmp.eq.s32.totalorder %s15, 0
      %p103 = por %p101, %p102
      %p104 = scmp.ne.s32.totalorder %s93, %s96
      %p105 = scmp.eq.s32.totalorder %s20, 1
      %p106 = por %p104, %p105
      %p107 = scmp.ne.s32.totalorder %s96, %s97
      %p108 = scmp.eq.s32.totalorder %s20, 0
      %p109 = por %p107, %p108
      %p110 = scmp.ne.s32.totalorder %s96, %s97
      %p111 = scmp.eq.s32.totalorder %s21, 1
      %p112 = por %p110, %p111
      %p114 = scmp.ne.s32.totalorder %s97, %s113
      %p115 = scmp.eq.s32.totalorder %s21, 0
      %p116 = por %p114, %p115
      %p117 = scmp.le.s32.totalorder 1, %s15
      %p118 = scmp.lt.s32.totalorder %s15, 3
      %p119 = pnand %p117, %p118
      %p120 = pneg %p119
      // Predicated region
      $region9: #{tpu_custom_call.1} parent=5 // pred_check
        _
      $region10: #{tpu_custom_call.1} parent=5 // pred_check_branch
        %122 = sbr.rel (%p119) target = $region12
      $region11: #{tpu_custom_call.1} parent=5 // pred_region
        %s123 = ssub.s32 %s15, 1
        // Predicated region
        $region13: #{tpu_custom_call.1} parent=11 // pred_check
          %p124 = pneg %p62
        $region14: #{tpu_custom_call.1} parent=11 // pred_check_branch
          %126 = sbr.rel (%p124) target = $region16
        $region15: #{tpu_custom_call.1} parent=11 // pred_region
          _
        $region16: #{tpu_custom_call.1} parent=11 // pred_fallthru
          _
        // Predicated region
        $region17: #{tpu_custom_call.1} parent=11 // pred_check
          %p127 = pneg %p83
        $region18: #{tpu_custom_call.1} parent=11 // pred_check_branch
          %129 = sbr.rel (%p127) target = $region20
        $region19: #{tpu_custom_call.1} parent=11 // pred_region
          _
        $region20: #{tpu_custom_call.1} parent=11 // pred_fallthru
          _
      $region12: #{tpu_custom_call.1} parent=5 // pred_fallthru
        _
      %p130 = scmp.lt.s32.totalorder %s15, 2
      // Predicated region
      $region21: #{tpu_custom_call.1} parent=5 // pred_check
        %p131 = pneg %p130
      $region22: #{tpu_custom_call.1} parent=5 // pred_check_branch
        %133 = sbr.rel (%p131) target = $region24
      $region23: #{tpu_custom_call.1} parent=5 // pred_region
        // Predicated region
        $region25: #{tpu_custom_call.1} parent=23 // pred_check
          %p134 = pneg %p35
        $region26: #{tpu_custom_call.1} parent=23 // pred_check_branch
          %136 = sbr.rel (%p134) target = $region28
        $region27: #{tpu_custom_call.1} parent=23 // pred_region
          %s137 = sand.u32 %s25, 1
          %s138 = scalar_lea.sflag [#allocation5], %s137
          %s139 = sand.u32 %s25, 1
          %s140 = smul.addr %s139, 16
          %s141 = scalar_lea.vmem [#allocation4], %s140
          %s142 = smul.u32 2, %s15
          %s144 = ssub.s32 256, 256
          %145 = vsyncadd %s138, %s144
          %s146 = smul.addr %s142, 2
          %s147 = smul.addr %s146, 64
          %s148 = scalar_lea.hbm %s0, %s147
          %s149 = sshll.u32 %s141, 4
          %s150 = int_to_ptr.vmem [resolvable:$true] %s149
          %155 = dma.hbm_to_vmem [thread:$0]  %s148, 256, %s150, %s138, 128, 128, 8
        $region28: #{tpu_custom_call.1} parent=23 // pred_fallthru
          _
      $region24: #{tpu_custom_call.1} parent=5 // pred_fallthru
        _
      %p156 = scmp.le.s32.totalorder 1, %s15
      %p157 = scmp.lt.s32.totalorder %s15, 3
      %p158 = pnand %p156, %p157
      %p159 = pneg %p158
      // Predicated region
      $region29: #{tpu_custom_call.1} parent=5 // pred_check
        _
      $region30: #{tpu_custom_call.1} parent=5 // pred_check_branch
        %161 = sbr.rel (%p158) target = $region32
      $region31: #{tpu_custom_call.1} parent=5 // pred_region
        %s162 = ssub.s32 %s15, 1
        %s163 = sand.u32 %s28, 1
        %s164 = scalar_lea.sflag [#allocation5], %s163
        %s165 = sand.u32 %s28, 1
        %s166 = smul.addr %s165, 16
        %s167 = scalar_lea.vmem [#allocation4], %s166
        // Predicated region
        $region33: #{tpu_custom_call.1} parent=31 // pred_check
          %p168 = pneg %p41
        $region34: #{tpu_custom_call.1} parent=31 // pred_check_branch
          %170 = sbr.rel (%p168) target = $region36
        $region35: #{tpu_custom_call.1} parent=31 // pred_region
          %171 = dma.done %s164, 256
        $region36: #{tpu_custom_call.1} parent=31 // pred_fallthru
          _
        %s172 = sand.u32 %s28, 1
        %s173 = scalar_lea.sflag [#allocation5], %s172
        %s174 = sand.u32 %s28, 1
        %s175 = smul.addr %s174, 16
        %s176 = scalar_lea.vmem [#allocation4], %s175
        %p177 = pneg %p41
        %p178 = pneg %p38
        %p179 = pneg %p62
        %p180 = pneg %p59
        %p181 = pneg %p83
        %p182 = pneg %p80
        %p183 = pneg %p109
        %p184 = pneg %p106
        %s185 = sand.u32 %s96, 1
        %s186 = scalar_lea.sflag [#allocation6], %s185
        %s187 = sand.u32 %s96, 1
        %s188 = smul.addr %s187, 32
        %s189 = scalar_lea.vmem [#allocation7], %s188
        %s190 = smul.u32 2, %s20
        %s191 = smul.u32 2, %s20
        %v192 = vlaneseq
        %v193 = vand.u32 %v192, 127
        %v194 = vadd.s32 %v193, 128
        %v195 = vand.u32 %v193, 15
        %v196 = vand.u32 %v194, 15
        %vm197 = vcmp.ge.s32.totalorder %v193, 16
        %vm198 = vcmp.ge.s32.totalorder %v194, 16
        %vm199 = vcmp.lt.s32.totalorder %v193, 240
        %vm200 = vcmp.lt.s32.totalorder %v194, 240
        %vm201 = vcmp.ne.s32.totalorder %v195, 0
        %vm202 = vcmp.ne.s32.totalorder %v196, 0
        %vm203 = vcmp.ne.s32.totalorder %v195, 15
        %vm204 = vcmp.ne.s32.totalorder %v196, 15
        %205 = vst [vmem:[#allocation3 + $0x80] sm:$0xf0] 0.0
        %206 = vst [vmem:[#allocation3 + $0x88] sm:$0xf0] 0.0
        %207 = vst [vmem:[#allocation3 + $0x90] sm:$0xf0] 0.0
        %208 = vst [vmem:[#allocation3 + $0x98] sm:$0xf0] 0.0
        %v209 = vld [vmem:[%s167] sm:$0xff]
        %210 = vst [vmem:[#allocation2 + $0x4] sm:$0xff] %v209
        %v211 = vld [vmem:[#allocation2] sm:$0xff]
        %v212 = vld [vmem:[#allocation2 + $0x8] sm:$0xf]
        %vm213 = vmand %vm197, %vm201
        %vm214 = vmand %vm198, %vm202
        %v215 = vsel %vm213, 1, 0
        %v216 = vsel %vm214, 1, 0
        %vm217 = vcmp.eq.s32.totalorder %v215, 1
        %vm218 = vcmp.eq.s32.totalorder %v216, 1
        %v221 = vcombine.high %v211, %v211
        %222 = vrot.lane.b32.xlu0 %v211, 17
        %v223 = vpop.permute.xlu0 %222
        %224 = vrot.lane.b32.xlu0 %v221, 17
        %v225 = vpop.permute.xlu0 %224
        %226 = vrot.lane.b32.xlu0 %v212, 17
        %v227 = vpop.permute.xlu0 %226
        %vm228 = vcmask 138240
        %v229 = vsel %vm228, %v223, %v225
        %v230 = vsel %vm228, %v225, %v227
        %v233 = vsel %vm217, %v229, 0.0
        %v234 = vsel %vm218, %v230, 0.0
        %235 = vst [vmem:[#allocation3] sm:$0xf] %v233
        %236 = vst [vmem:[#allocation3 + $0x8] sm:$0xf] %v234
        %v237 = vld [vmem:[#allocation2] sm:$0xff]
        %v238 = vld [vmem:[#allocation2 + $0x8] sm:$0xf]
        %v239 = vsel %vm197, 1, 0
        %v240 = vsel %vm198, 1, 0
        %vm241 = vcmp.eq.s32.totalorder %v239, 1
        %vm242 = vcmp.eq.s32.totalorder %v240, 1
        %v245 = vcombine.high %v237, %v237
        %246 = vrot.lane.b32.xlu0 %v237, 16
        %v247 = vpop.permute.xlu0 %246
        %248 = vrot.lane.b32.xlu0 %v245, 16
        %v249 = vpop.permute.xlu0 %248
        %250 = vrot.lane.b32.xlu0 %v238, 16
        %v251 = vpop.permute.xlu0 %250
        %vm252 = vcmask 130048
        %v253 = vsel %vm252, %v247, %v249
        %v254 = vsel %vm252, %v249, %v251
        %v257 = vsel %vm241, %v253, 0.0
        %v258 = vsel %vm242, %v254, 0.0
        %v261 = vrot.slane %v257, 4
        %v262 = vrot.slane %v258, 4
        %265 = vst [vmem:[#allocation3] sm:$0xf0] %v261
        %266 = vst [vmem:[#allocation3 + $0x8] sm:$0xf0] %v262
        %v267 = vld [vmem:[#allocation2] sm:$0xff]
        %v268 = vld [vmem:[#allocation2 + $0x8] sm:$0xf]
        %vm269 = vmand %vm197, %vm203
        %vm270 = vmand %vm198, %vm204
        %v271 = vsel %vm269, 1, 0
        %v272 = vsel %vm270, 1, 0
        %vm273 = vcmp.eq.s32.totalorder %v271, 1
        %vm274 = vcmp.eq.s32.totalorder %v272, 1
        %v277 = vcombine.high %v267, %v267
        %278 = vrot.lane.b32.xlu0 %v267, 15
        %v279 = vpop.permute.xlu0 %278
        %280 = vrot.lane.b32.xlu0 %v277, 15
        %v281 = vpop.permute.xlu0 %280
        %282 = vrot.lane.b32.xlu0 %v268, 15
        %v283 = vpop.permute.xlu0 %282
        %vm284 = vcmask 121856
        %v285 = vsel %vm284, %v279, %v281
        %v286 = vsel %vm284, %v281, %v283
        %v289 = vsel %vm273, %v285, 0.0
        %v290 = vsel %vm274, %v286, 0.0
        %291 = vst [vmem:[#allocation3 + $0x20] sm:$0xf] %v289
        %292 = vst [vmem:[#allocation3 + $0x28] sm:$0xf] %v290
        %v293 = vld [vmem:[#allocation2] sm:$0xff]
        %v294 = vld [vmem:[#allocation2 + $0x8] sm:$0xf]
        %v295 = vsel %vm201, 1, 0
        %v296 = vsel %vm202, 1, 0
        %vm297 = vcmp.eq.s32.totalorder %v295, 1
        %vm298 = vcmp.eq.s32.totalorder %v296, 1
        %v301 = vcombine.high %v293, %v293
        %302 = vrot.lane.b32.xlu0 %v293, 1
        %v303 = vpop.permute.xlu0 %302
        %304 = vrot.lane.b32.xlu0 %v301, 1
        %v305 = vpop.permute.xlu0 %304
        %306 = vrot.lane.b32.xlu0 %v294, 1
        %v307 = vpop.permute.xlu0 %306
        %vm308 = vcmask 7168
        %v309 = vsel %vm308, %v303, %v305
        %v310 = vsel %vm308, %v305, %v307
        %v313 = vsel %vm297, %v309, 0.0
        %v314 = vsel %vm298, %v310, 0.0
        %v317 = vrot.slane %v313, 4
        %v318 = vrot.slane %v314, 4
        %321 = vst [vmem:[#allocation3 + $0x20] sm:$0xf0] %v317
        %322 = vst [vmem:[#allocation3 + $0x28] sm:$0xf0] %v318
        %v323 = vld [vmem:[#allocation2 + $0x4] sm:$0xff]
        %v325 = vcombine.high %v323, %v323
        %327 = vst [vmem:[#allocation3 + $0x40] sm:$0xf] %v323
        %328 = vst [vmem:[#allocation3 + $0x48] sm:$0xf] %v325
        %v329 = vld [vmem:[#allocation2 + $0x4] sm:$0xff]
        %v330 = vld [vmem:[#allocation2 + $0xc] sm:$0xf]
        %v331 = vsel %vm203, 1, 0
        %v332 = vsel %vm204, 1, 0
        %vm333 = vcmp.eq.s32.totalorder %v331, 1
        %vm334 = vcmp.eq.s32.totalorder %v332, 1
        %v337 = vcombine.high %v329, %v329
        %338 = vrot.lane.b32.xlu0 %v329, 127
        %v339 = vpop.permute.xlu0 %338
        %340 = vrot.lane.b32.xlu0 %v337, 127
        %v341 = vpop.permute.xlu0 %340
        %342 = vrot.lane.b32.xlu0 %v330, 127
        %v343 = vpop.permute.xlu0 %342
        %vm344 = vcmask 1039360
        %v345 = vsel %vm344, %v339, %v341
        %v346 = vsel %vm344, %v341, %v343
        %v349 = vsel %vm333, %v345, 0.0
        %v350 = vsel %vm334, %v346, 0.0
        %v353 = vrot.slane %v349, 4
        %v354 = vrot.slane %v350, 4
        %357 = vst [vmem:[#allocation3 + $0x40] sm:$0xf0] %v353
        %358 = vst [vmem:[#allocation3 + $0x48] sm:$0xf0] %v354
        %v359 = vld [vmem:[#allocation2 + $0x4] sm:$0xff]
        %v360 = vld [vmem:[#allocation2 + $0xc] sm:$0xf]
        %vm361 = vmand %vm199, %vm201
        %vm362 = vmand %vm200, %vm202
        %v363 = vsel %vm361, 1, 0
        %v364 = vsel %vm362, 1, 0
        %vm365 = vcmp.eq.s32.totalorder %v363, 1
        %vm366 = vcmp.eq.s32.totalorder %v364, 1
        %v369 = vcombine.high %v359, %v359
        %370 = vrot.lane.b32.xlu0 %v359, 113
        %v371 = vpop.permute.xlu0 %370
        %372 = vrot.lane.b32.xlu0 %v369, 113
        %v373 = vpop.permute.xlu0 %372
        %374 = vrot.lane.b32.xlu0 %v360, 113
        %v375 = vpop.permute.xlu0 %374
        %vm376 = vcmask 924672
        %v377 = vsel %vm376, %v371, %v373
        %v378 = vsel %vm376, %v373, %v375
        %v381 = vsel %vm365, %v377, 0.0
        %v382 = vsel %vm366, %v378, 0.0
        %383 = vst [vmem:[#allocation3 + $0x60] sm:$0xf] %v381
        %384 = vst [vmem:[#allocation3 + $0x68] sm:$0xf] %v382
        %v385 = vld [vmem:[#allocation2 + $0x4] sm:$0xff]
        %v386 = vld [vmem:[#allocation2 + $0xc] sm:$0xf]
        %v387 = vsel %vm199, 1, 0
        %v388 = vsel %vm200, 1, 0
        %vm389 = vcmp.eq.s32.totalorder %v387, 1
        %vm390 = vcmp.eq.s32.totalorder %v388, 1
        %v393 = vcombine.high %v385, %v385
        %394 = vrot.lane.b32.xlu0 %v385, 112
        %v395 = vpop.permute.xlu0 %394
        %396 = vrot.lane.b32.xlu0 %v393, 112
        %v397 = vpop.permute.xlu0 %396
        %398 = vrot.lane.b32.xlu0 %v386, 112
        %v399 = vpop.permute.xlu0 %398
        %vm400 = vcmask 916480
        %v401 = vsel %vm400, %v395, %v397
        %v402 = vsel %vm400, %v397, %v399
        %v405 = vsel %vm389, %v401, 0.0
        %v406 = vsel %vm390, %v402, 0.0
        %v409 = vrot.slane %v405, 4
        %v410 = vrot.slane %v406, 4
        %413 = vst [vmem:[#allocation3 + $0x60] sm:$0xf0] %v409
        %414 = vst [vmem:[#allocation3 + $0x68] sm:$0xf0] %v410
        %v415 = vld [vmem:[#allocation2 + $0x4] sm:$0xff]
        %v416 = vld [vmem:[#allocation2 + $0xc] sm:$0xf]
        %vm417 = vmand %vm199, %vm203
        %vm418 = vmand %vm200, %vm204
        %v419 = vsel %vm417, 1, 0
        %v420 = vsel %vm418, 1, 0
        %vm421 = vcmp.eq.s32.totalorder %v419, 1
        %vm422 = vcmp.eq.s32.totalorder %v420, 1
        %v425 = vcombine.high %v415, %v415
        %426 = vrot.lane.b32.xlu0 %v415, 111
        %v427 = vpop.permute.xlu0 %426
        %428 = vrot.lane.b32.xlu0 %v425, 111
        %v429 = vpop.permute.xlu0 %428
        %430 = vrot.lane.b32.xlu0 %v416, 111
        %v431 = vpop.permute.xlu0 %430
        %vm432 = vcmask 908288
        %v433 = vsel %vm432, %v427, %v429
        %v434 = vsel %vm432, %v429, %v431
        %v437 = vsel %vm421, %v433, 0.0
        %v438 = vsel %vm422, %v434, 0.0
        %439 = vst [vmem:[#allocation3 + $0x80] sm:$0xf] %v437
        %440 = vst [vmem:[#allocation3 + $0x88] sm:$0xf] %v438
        %s441 = scalar_lea.vmem %s167, 8 [#allocation4]
        %v442 = vld [vmem:[%s441] sm:$0xff]
        %443 = vst [vmem:[#allocation2 + $0x4] sm:$0xff] %v442
        %v444 = vld [vmem:[#allocation2] sm:$0xff]
        %v445 = vld [vmem:[#allocation2 + $0x8] sm:$0xf]
        %v448 = vcombine.high %v444, %v444
        %449 = vrot.lane.b32.xlu0 %v444, 17
        %v450 = vpop.permute.xlu0 %449
        %451 = vrot.lane.b32.xlu0 %v448, 17
        %v452 = vpop.permute.xlu0 %451
        %453 = vrot.lane.b32.xlu0 %v445, 17
        %v454 = vpop.permute.xlu0 %453
        %v455 = vsel %vm228, %v450, %v452
        %v456 = vsel %vm228, %v452, %v454
        %v459 = vsel %vm217, %v455, 0.0
        %v460 = vsel %vm218, %v456, 0.0
        %461 = vst [vmem:[#allocation3 + $0x10] sm:$0xf] %v459
        %462 = vst [vmem:[#allocation3 + $0x18] sm:$0xf] %v460
        %v463 = vld [vmem:[#allocation2] sm:$0xff]
        %v464 = vld [vmem:[#allocation2 + $0x8] sm:$0xf]
        %v467 = vcombine.high %v463, %v463
        %468 = vrot.lane.b32.xlu0 %v463, 16
        %v469 = vpop.permute.xlu0 %468
        %470 = vrot.lane.b32.xlu0 %v467, 16
        %v471 = vpop.permute.xlu0 %470
        %472 = vrot.lane.b32.xlu0 %v464, 16
        %v473 = vpop.permute.xlu0 %472
        %v474 = vsel %vm252, %v469, %v471
        %v475 = vsel %vm252, %v471, %v473
        %v478 = vsel %vm241, %v474, 0.0
        %v479 = vsel %vm242, %v475, 0.0
        %v482 = vrot.slane %v478, 4
        %v483 = vrot.slane %v479, 4
        %486 = vst [vmem:[#allocation3 + $0x10] sm:$0xf0] %v482
        %487 = vst [vmem:[#allocation3 + $0x18] sm:$0xf0] %v483
        %v488 = vld [vmem:[#allocation2] sm:$0xff]
        %v489 = vld [vmem:[#allocation2 + $0x8] sm:$0xf]
        %v492 = vcombine.high %v488, %v488
        %493 = vrot.lane.b32.xlu0 %v488, 15
        %v494 = vpop.permute.xlu0 %493
        %495 = vrot.lane.b32.xlu0 %v492, 15
        %v496 = vpop.permute.xlu0 %495
        %497 = vrot.lane.b32.xlu0 %v489, 15
        %v498 = vpop.permute.xlu0 %497
        %v499 = vsel %vm284, %v494, %v496
        %v500 = vsel %vm284, %v496, %v498
        %v503 = vsel %vm273, %v499, 0.0
        %v504 = vsel %vm274, %v500, 0.0
        %505 = vst [vmem:[#allocation3 + $0x30] sm:$0xf] %v503
        %506 = vst [vmem:[#allocation3 + $0x38] sm:$0xf] %v504
        %v507 = vld [vmem:[#allocation2] sm:$0xff]
        %v508 = vld [vmem:[#allocation2 + $0x8] sm:$0xf]
        %v511 = vcombine.high %v507, %v507
        %512 = vrot.lane.b32.xlu0 %v507, 1
        %v513 = vpop.permute.xlu0 %512
        %514 = vrot.lane.b32.xlu0 %v511, 1
        %v515 = vpop.permute.xlu0 %514
        %516 = vrot.lane.b32.xlu0 %v508, 1
        %v517 = vpop.permute.xlu0 %516
        %v518 = vsel %vm308, %v513, %v515
        %v519 = vsel %vm308, %v515, %v517
        %v522 = vsel %vm297, %v518, 0.0
        %v523 = vsel %vm298, %v519, 0.0
        %v526 = vrot.slane %v522, 4
        %v527 = vrot.slane %v523, 4
        %530 = vst [vmem:[#allocation3 + $0x30] sm:$0xf0] %v526
        %531 = vst [vmem:[#allocation3 + $0x38] sm:$0xf0] %v527
        %v532 = vld [vmem:[#allocation2 + $0x4] sm:$0xff]
        %v534 = vcombine.high %v532, %v532
        %536 = vst [vmem:[#allocation3 + $0x50] sm:$0xf] %v532
        %537 = vst [vmem:[#allocation3 + $0x58] sm:$0xf] %v534
        %v538 = vld [vmem:[#allocation2 + $0x4] sm:$0xff]
        %v539 = vld [vmem:[#allocation2 + $0xc] sm:$0xf]
        %v542 = vcombine.high %v538, %v538
        %543 = vrot.lane.b32.xlu0 %v538, 127
        %v544 = vpop.permute.xlu0 %543
        %545 = vrot.lane.b32.xlu0 %v542, 127
        %v546 = vpop.permute.xlu0 %545
        %547 = vrot.lane.b32.xlu0 %v539, 127
        %v548 = vpop.permute.xlu0 %547
        %v549 = vsel %vm344, %v544, %v546
        %v550 = vsel %vm344, %v546, %v548
        %v553 = vsel %vm333, %v549, 0.0
        %v554 = vsel %vm334, %v550, 0.0
        %v557 = vrot.slane %v553, 4
        %v558 = vrot.slane %v554, 4
        %561 = vst [vmem:[#allocation3 + $0x50] sm:$0xf0] %v557
        %562 = vst [vmem:[#allocation3 + $0x58] sm:$0xf0] %v558
        %v563 = vld [vmem:[#allocation2 + $0x4] sm:$0xff]
        %v564 = vld [vmem:[#allocation2 + $0xc] sm:$0xf]
        %v567 = vcombine.high %v563, %v563
        %568 = vrot.lane.b32.xlu0 %v563, 113
        %v569 = vpop.permute.xlu0 %568
        %570 = vrot.lane.b32.xlu0 %v567, 113
        %v571 = vpop.permute.xlu0 %570
        %572 = vrot.lane.b32.xlu0 %v564, 113
        %v573 = vpop.permute.xlu0 %572
        %v574 = vsel %vm376, %v569, %v571
        %v575 = vsel %vm376, %v571, %v573
        %v578 = vsel %vm365, %v574, 0.0
        %v579 = vsel %vm366, %v575, 0.0
        %580 = vst [vmem:[#allocation3 + $0x70] sm:$0xf] %v578
        %581 = vst [vmem:[#allocation3 + $0x78] sm:$0xf] %v579
        %v582 = vld [vmem:[#allocation2 + $0x4] sm:$0xff]
        %v583 = vld [vmem:[#allocation2 + $0xc] sm:$0xf]
        %v586 = vcombine.high %v582, %v582
        %587 = vrot.lane.b32.xlu0 %v582, 112
        %v588 = vpop.permute.xlu0 %587
        %589 = vrot.lane.b32.xlu0 %v586, 112
        %v590 = vpop.permute.xlu0 %589
        %591 = vrot.lane.b32.xlu0 %v583, 112
        %v592 = vpop.permute.xlu0 %591
        %v593 = vsel %vm400, %v588, %v590
        %v594 = vsel %vm400, %v590, %v592
        %v597 = vsel %vm389, %v593, 0.0
        %v598 = vsel %vm390, %v594, 0.0
        %v601 = vrot.slane %v597, 4
        %v602 = vrot.slane %v598, 4
        %605 = vst [vmem:[#allocation3 + $0x70] sm:$0xf0] %v601
        %606 = vst [vmem:[#allocation3 + $0x78] sm:$0xf0] %v602
        %v607 = vld [vmem:[#allocation2 + $0x4] sm:$0xff]
        %v608 = vld [vmem:[#allocation2 + $0xc] sm:$0xf]
        %v611 = vcombine.high %v607, %v607
        %612 = vrot.lane.b32.xlu0 %v607, 111
        %v613 = vpop.permute.xlu0 %612
        %614 = vrot.lane.b32.xlu0 %v611, 111
        %v615 = vpop.permute.xlu0 %614
        %616 = vrot.lane.b32.xlu0 %v608, 111
        %v617 = vpop.permute.xlu0 %616
        %v618 = vsel %vm432, %v613, %v615
        %v619 = vsel %vm432, %v615, %v617
        %v622 = vsel %vm421, %v618, 0.0
        %v623 = vsel %vm422, %v619, 0.0
        %624 = vst [vmem:[#allocation3 + $0x90] sm:$0xf] %v622
        %625 = vst [vmem:[#allocation3 + $0x98] sm:$0xf] %v623
        %v626 = vld [vmem:[%s1] sm:$0xff]
        %v627 = vld [vmem:[#allocation3] sm:$0xff]
        %v628 = vld [vmem:[#allocation3 + $0x8] sm:$0xff]
        %v629 = vld [vmem:[#allocation3 + $0x10] sm:$0xff]
        %v630 = vld [vmem:[#allocation3 + $0x18] sm:$0xff]
        %v631 = vld [vmem:[#allocation3 + $0x20] sm:$0xff]
        %v632 = vld [vmem:[#allocation3 + $0x28] sm:$0xff]
        %v633 = vld [vmem:[#allocation3 + $0x30] sm:$0xff]
        %v634 = vld [vmem:[#allocation3 + $0x38] sm:$0xff]
        %v635 = vld [vmem:[#allocation3 + $0x40] sm:$0xff]
        %v636 = vld [vmem:[#allocation3 + $0x48] sm:$0xff]
        %v637 = vld [vmem:[#allocation3 + $0x50] sm:$0xff]
        %v638 = vld [vmem:[#allocation3 + $0x58] sm:$0xff]
        %v639 = vld [vmem:[#allocation3 + $0x60] sm:$0xff]
        %v640 = vld [vmem:[#allocation3 + $0x68] sm:$0xff]
        %v641 = vld [vmem:[#allocation3 + $0x70] sm:$0xff]
        %v642 = vld [vmem:[#allocation3 + $0x78] sm:$0xff]
        %v643 = vld [vmem:[#allocation3 + $0x80] sm:$0xff]
        %v644 = vld [vmem:[#allocation3 + $0x88] sm:$0xff]
        %v645 = vld [vmem:[#allocation3 + $0x90] sm:$0xff]
        %v646 = vld [vmem:[#allocation3 + $0x98] sm:$0xff]
        %v647 = vld [vmem:[%s2] sm:$0xff]
        %649 = vset.pattern.permute.xlu0 0
        %650 = vperm.xlu0 %649, %v647
        %v651 = vpop.permute.xlu0 %650
        %vm653 = vcmask 326656
        %v655 = vsel %vm653, %v626, 0
        %657 = vmatprep.subr.mxu0 0.0
        %658 = vmatpush1.msra.mxu0 0.0
        %659 = vmatprep.subr.mxu0 0.0
        %660 = vmatpush1.msra.mxu0 0.0
        %661 = vmatprep.subr.mxu0 0.0
        %662 = vmatpush1.msra.mxu0 0.0
        %663 = vmatprep.subr.mxu0 0.0
        %664 = vmatpush1.msra.mxu0 0.0
        %665 = vmatprep.subr.mxu0 0.0
        %666 = vmatpush1.msra.mxu0 0.0
        %667 = vmatprep.subr.mxu0 0.0
        %668 = vmatpush1.msra.mxu0 0.0
        %669 = vmatprep.subr.mxu0 0.0
        %670 = vmatpush1.msra.mxu0 0.0
        %671 = vmatprep.subr.mxu0 0.0
        %672 = vmatpush1.msra.mxu0 0.0
        %673 = vmatprep.subr.mxu0 0.0
        %674 = vmatpush1.msra.mxu0 0.0
        %675 = vmatprep.subr.mxu0 0.0
        %676 = vmatpush1.msra.mxu0 0.0
        %677 = vmatprep.subr.mxu0 0.0
        %678 = vmatpush1.msra.mxu0 0.0
        %679 = vmatprep.subr.mxu0 %v644
        %680 = vmatpush1.msra.mxu0 %v643
        %681 = vmatprep.subr.mxu0 %v640
        %682 = vmatpush1.msra.mxu0 %v639
        %683 = vmatprep.subr.mxu0 %v636
        %684 = vmatpush1.msra.mxu0 %v635
        %685 = vmatprep.subr.mxu0 %v632
        %686 = vmatpush1.msra.mxu0 %v631
        %687 = vmatprep.subr.mxu0 %v628
        %688 = vmatpush1.msra.mxu0 %v627
        %689 = vmatprep.subr.mxu0 0.0
        %690 = vmatpush2.msra.mxu0 0.0
        %691 = vmatprep.subr.mxu0 0.0
        %692 = vmatpush2.msra.mxu0 0.0
        %693 = vmatprep.subr.mxu0 0.0
        %694 = vmatpush2.msra.mxu0 0.0
        %695 = vmatprep.subr.mxu0 0.0
        %696 = vmatpush2.msra.mxu0 0.0
        %697 = vmatprep.subr.mxu0 0.0
        %698 = vmatpush2.msra.mxu0 0.0
        %699 = vmatprep.subr.mxu0 0.0
        %700 = vmatpush2.msra.mxu0 0.0
        %701 = vmatprep.subr.mxu0 0.0
        %702 = vmatpush2.msra.mxu0 0.0
        %703 = vmatprep.subr.mxu0 0.0
        %704 = vmatpush2.msra.mxu0 0.0
        %705 = vmatprep.subr.mxu0 0.0
        %706 = vmatpush2.msra.mxu0 0.0
        %707 = vmatprep.subr.mxu0 0.0
        %708 = vmatpush2.msra.mxu0 0.0
        %709 = vmatprep.subr.mxu0 0.0
        %710 = vmatpush2.msra.mxu0 0.0
        %711 = vmatprep.subr.mxu0 0.0
        %712 = vmatpush2.msra.mxu0 0.0
        %713 = vmatprep.subr.mxu0 0.0
        %714 = vmatpush2.msra.mxu0 0.0
        %715 = vmatprep.subr.mxu0 0.0
        %716 = vmatpush2.msra.mxu0 0.0
        %717 = vmatprep.subr.mxu0 0.0
        %718 = vmatpush2.msra.mxu0 0.0
        %719 = vmatprep.subr.mxu0 0.0
        %720 = vmatpush2.msra.mxu0 0.0
        %721 = vmatprep.mubr.f32.mxu0 0.0
        %722 = vmatmul.mubr.f32.gmra.mxu0 %v655
        %v723 = vpop.f32.mrf.mxu0
        %v724 = vadd.f32 %v651, %v723
        %v725 = vpop.f32.mrf.mxu0
        %v726 = vadd.f32 %v651, %v725
        %727 = vdwg.mxu0
        %728 = vmatprep.subr.mxu0 0.0
        %729 = vmatpush1.msra.mxu0 0.0
        %730 = vmatprep.subr.mxu0 0.0
        %731 = vmatpush1.msra.mxu0 0.0
        %732 = vmatprep.subr.mxu0 0.0
        %733 = vmatpush1.msra.mxu0 0.0
        %734 = vmatprep.subr.mxu0 0.0
        %735 = vmatpush1.msra.mxu0 0.0
        %736 = vmatprep.subr.mxu0 0.0
        %737 = vmatpush1.msra.mxu0 0.0
        %738 = vmatprep.subr.mxu0 0.0
        %739 = vmatpush1.msra.mxu0 0.0
        %740 = vmatprep.subr.mxu0 0.0
        %741 = vmatpush1.msra.mxu0 0.0
        %742 = vmatprep.subr.mxu0 0.0
        %743 = vmatpush1.msra.mxu0 0.0
        %744 = vmatprep.subr.mxu0 0.0
        %745 = vmatpush1.msra.mxu0 0.0
        %746 = vmatprep.subr.mxu0 0.0
        %747 = vmatpush1.msra.mxu0 0.0
        %748 = vmatprep.subr.mxu0 0.0
        %749 = vmatpush1.msra.mxu0 0.0
        %750 = vmatprep.subr.mxu0 %v646
        %751 = vmatpush1.msra.mxu0 %v645
        %752 = vmatprep.subr.mxu0 %v642
        %753 = vmatpush1.msra.mxu0 %v641
        %754 = vmatprep.subr.mxu0 %v638
        %755 = vmatpush1.msra.mxu0 %v637
        %756 = vmatprep.subr.mxu0 %v634
        %757 = vmatpush1.msra.mxu0 %v633
        %758 = vmatprep.subr.mxu0 %v630
        %759 = vmatpush1.msra.mxu0 %v629
        %760 = vmatprep.subr.mxu0 0.0
        %761 = vmatpush2.msra.mxu0 0.0
        %762 = vmatprep.subr.mxu0 0.0
        %763 = vmatpush2.msra.mxu0 0.0
        %764 = vmatprep.subr.mxu0 0.0
        %765 = vmatpush2.msra.mxu0 0.0
        %766 = vmatprep.subr.mxu0 0.0
        %767 = vmatpush2.msra.mxu0 0.0
        %768 = vmatprep.subr.mxu0 0.0
        %769 = vmatpush2.msra.mxu0 0.0
        %770 = vmatprep.subr.mxu0 0.0
        %771 = vmatpush2.msra.mxu0 0.0
        %772 = vmatprep.subr.mxu0 0.0
        %773 = vmatpush2.msra.mxu0 0.0
        %774 = vmatprep.subr.mxu0 0.0
        %775 = vmatpush2.msra.mxu0 0.0
        %776 = vmatprep.subr.mxu0 0.0
        %777 = vmatpush2.msra.mxu0 0.0
        %778 = vmatprep.subr.mxu0 0.0
        %779 = vmatpush2.msra.mxu0 0.0
        %780 = vmatprep.subr.mxu0 0.0
        %781 = vmatpush2.msra.mxu0 0.0
        %782 = vmatprep.subr.mxu0 0.0
        %783 = vmatpush2.msra.mxu0 0.0
        %784 = vmatprep.subr.mxu0 0.0
        %785 = vmatpush2.msra.mxu0 0.0
        %786 = vmatprep.subr.mxu0 0.0
        %787 = vmatpush2.msra.mxu0 0.0
        %788 = vmatprep.subr.mxu0 0.0
        %789 = vmatpush2.msra.mxu0 0.0
        %790 = vmatprep.subr.mxu0 0.0
        %791 = vmatpush2.msra.mxu0 0.0
        %792 = vmatprep.mubr.f32.mxu0 0.0
        %793 = vmatmul.mubr.f32.gmra.mxu0 %v655
        %v794 = vpop.f32.mrf.mxu0
        %v795 = vadd.f32 %v651, %v794
        %v796 = vpop.f32.mrf.mxu0
        %v797 = vadd.f32 %v651, %v796
        %798 = vdwg.mxu0
        %799 = vst [vmem:[%s189] sm:$0xff] %v724
        %800 = vst [vmem:[%s189 + $0x8] sm:$0xff] %v726
        %s801 = scalar_lea.vmem %s189, 16 [#allocation7]
        %802 = vst [vmem:[%s801] sm:$0xff] %v795
        %803 = vst [vmem:[%s801 + $0x8] sm:$0xff] %v797
        %s804 = sand.u32 %s96, 1
        %s805 = scalar_lea.sflag [#allocation6], %s804
        %s806 = sand.u32 %s96, 1
        %s807 = smul.addr %s806, 32
        %s808 = scalar_lea.vmem [#allocation7], %s807
        // Predicated region
        $region37: #{tpu_custom_call.1} parent=31 // pred_check
          %p809 = pneg %p106
        $region38: #{tpu_custom_call.1} parent=31 // pred_check_branch
          %811 = sbr.rel (%p809) target = $region40
        $region39: #{tpu_custom_call.1} parent=31 // pred_region
          %s812 = smul.u32 2, %s20
          %s814 = ssub.s32 512, 512
          %815 = vsyncadd %s805, %s814
          %s816 = smul.addr %s812, 2
          %s817 = smul.addr %s816, 128
          %s818 = scalar_lea.hbm %s3, %s817
          %s819 = sshll.u32 %s808, 4
          %s820 = int_to_ptr.vmem [resolvable:$true] %s819
          %825 = dma.vmem_to_hbm [thread:$0]  %s820, 512, %s818, %s805, 256, 256, 16
        $region40: #{tpu_custom_call.1} parent=31 // pred_fallthru
          _
      $region32: #{tpu_custom_call.1} parent=5 // pred_fallthru
        _
      %p826 = scmp.le.s32.totalorder 2, %s15
      // Predicated region
      $region41: #{tpu_custom_call.1} parent=5 // pred_check
        %p827 = pneg %p826
      $region42: #{tpu_custom_call.1} parent=5 // pred_check_branch
        %829 = sbr.rel (%p827) target = $region44
      $region43: #{tpu_custom_call.1} parent=5 // pred_region
        %s830 = ssub.s32 %s15, 2
        // Predicated region
        $region45: #{tpu_custom_call.1} parent=43 // pred_check
          %p831 = pneg %p112
        $region46: #{tpu_custom_call.1} parent=43 // pred_check_branch
          %833 = sbr.rel (%p831) target = $region48
        $region47: #{tpu_custom_call.1} parent=43 // pred_region
          %s834 = sand.u32 %s97, 1
          %s835 = scalar_lea.sflag [#allocation6], %s834
          %s836 = sand.u32 %s97, 1
          %s837 = smul.addr %s836, 32
          %s838 = scalar_lea.vmem [#allocation7], %s837
          %839 = dma.done %s835, 512
        $region48: #{tpu_custom_call.1} parent=43 // pred_fallthru
          _
      $region44: #{tpu_custom_call.1} parent=5 // pred_fallthru
        _
    $region6: #{tpu_custom_call.1} parent=1 // loop_footer
      %s19 = sadd.s32 1, %s15
    $region7: #{tpu_custom_call.1} parent=1 // loop_footer_branch
      %14 = sbr.rel target = $region3
    $region8: #{tpu_custom_call.1} parent=1 // loop_exit
      _
    %840 = vsyncpa [#allocation5], 1
    %s841 = scalar_lea.sflag [#allocation5], 1
    %842 = vsyncpa %s841, 1
    %843 = vsyncpa [#allocation6], 1
    %s844 = scalar_lea.sflag [#allocation6], 1
    %845 = vsyncpa %s844, 1

</llo_original>
